<compile_context>
chip_gen: v7x
topology: tpu7x:2x2x1
jax: 0.10.0
libtpu: 0.0.40
codegen_flags: <defaults>
</compile_context>

<pallas_src>
import functools

import jax
import jax.numpy as jnp
from jax.experimental import pallas as pl
from jax.experimental.pallas import tpu as pltpu


def _round_up(x, m):
    return (x + m - 1) // m * m


# ---------------------------------------------------------------------------
# Pallas kernel: in-VMEM im2col + fused matmul + BN affine + ReLU + 2x2 max-pool
# ---------------------------------------------------------------------------
def _conv_block_kernel(x_ref, w_ref, scale_ref, shift_ref, out_ref, *, cin, wh, lv):
    # x_ref    : (1, 4*Cin, Lp)  bf16 -- 4 stride-2 phases of the padded input, spatially
    #                                    flattened row-major (phase p = pr*2+pc at rows
    #                                    [p*Cin, (p+1)*Cin), lane index = a*Wh + b).
    # w_ref    : (Cout, 9*Cin)   bf16 -- conv weights, column order (dy, dx, cin).
    # scale_ref: (Cout, 1) f32        -- gamma / sqrt(var + eps)
    # shift_ref: (Cout, 1) f32        -- beta + (bias - mean) * scale
    # out_ref  : (1, Cout, Lv)   f32  -- pooled output, flat index io*Wh + jo on lanes.
    x = x_ref[0]                                          # (4*Cin, Lp)

    # Build the im2col RHS for all 4 pool positions: (9*Cin, 4*Lv).
    pool_chunks = []
    for di in range(2):                                   # pool-window row offset
        for dj in range(2):                               # pool-window col offset
            taps = []
            for dy in range(3):                           # conv tap row
                for dx in range(3):                       # conv tap col
                    r, c = di + dy, dj + dx               # offset inside padded image
                    p = (r % 2) * 2 + (c % 2)             # which stride-2 phase
                    off = (r // 2) * wh + (c // 2)        # flat lane offset inside phase
                    taps.append(x[p * cin:(p + 1) * cin, off:off + lv])   # (Cin, Lv)
            pool_chunks.append(jnp.concatenate(taps, axis=0))             # (9*Cin, Lv)
    rhs = jnp.concatenate(pool_chunks, axis=1)                            # (9*Cin, 4*Lv)

    # One MXU call for conv over all 4 pool positions (bf16 in, f32 accumulate).
    z = jnp.dot(w_ref[...], rhs, preferred_element_type=jnp.float32)      # (Cout, 4*Lv)

    # Folded conv-bias + BatchNorm affine, then ReLU (Dropout = identity in eval mode).
    z = z * scale_ref[...] + shift_ref[...]
    z = jnp.maximum(z, 0.0)

    # MaxPool2d(2, 2): elementwise max over the 4 pool-position lane chunks.
    pooled = jnp.maximum(jnp.maximum(z[:, 0:lv], z[:, lv:2 * lv]),
                         jnp.maximum(z[:, 2 * lv:3 * lv], z[:, 3 * lv:4 * lv]))
    out_ref[0] = pooled.astype(out_ref.dtype)


# ---------------------------------------------------------------------------
# Wrapper: cheap layout prep (pad + space-to-depth), pallas_call, un-pad output
# ---------------------------------------------------------------------------
def conv_block_forward(x, w, b, gamma, beta, run_mean, run_var, eps=1e-5,
                       compute_dtype=jnp.bfloat16):
    """Eval-mode MyConvolutionBlock. x: (N, Cin, H, W) -> (N, Cout, H//2, W//2)."""
    N, Cin, H, W = x.shape
    Cout = w.shape[0]
    assert H % 2 == 0 and W % 2 == 0, "kernel assumes even H, W (floor-mode MaxPool2d(2,2))"
    Ho, Wo = H // 2, W // 2

    # Fold conv bias + BatchNorm (running stats) into per-channel scale/shift.
    scale = gamma / jnp.sqrt(run_var + eps)                       # (Cout,)
    shift = beta + (b - run_mean) * scale                         # (Cout,)

    # Zero-pad spatially for the conv (pad=1); H+2, W+2 are even since H, W are even.
    xp = jnp.pad(x, ((0, 0), (0, 0), (1, 1), (1, 1)))             # (N, Cin, H+2, W+2)
    Hh, Wh = (H + 2) // 2, (W + 2) // 2

    # Space-to-depth: phase (pr, pc) = xp[:, :, pr::2, pc::2]; pure permutation (~1x bytes).
    xph = xp.reshape(N, Cin, Hh, 2, Wh, 2)
    xph = jnp.transpose(xph, (0, 3, 5, 1, 2, 4))                  # (N, 2, 2, Cin, Hh, Wh)
    xph = xph.reshape(N, 4 * Cin, Hh * Wh)

    # Flatten phase images onto the lane axis; pad so every fixed-length tap slice
    # (max lane offset = Wh + 1) stays in bounds and Lv is a multiple of 128 (lane-dense).
    max_off = Wh + 1
    Lv = _round_up(Ho * Wh, 128)
    Lp = _round_up(max(Hh * Wh, max_off + Lv), 128)
    xk = jnp.pad(xph, ((0, 0), (0, 0), (0, Lp - Hh * Wh))).astype(compute_dtype)

    # Weights (Cout, Cin, 3, 3) -> (Cout, (dy, dx, cin)) matching the kernel's tap order.
    wk = jnp.transpose(w, (0, 2, 3, 1)).reshape(Cout, 9 * Cin).astype(compute_dtype)
    scale2 = scale.reshape(Cout, 1).astype(jnp.float32)
    shift2 = shift.reshape(Cout, 1).astype(jnp.float32)

    kernel = functools.partial(_conv_block_kernel, cin=Cin, wh=Wh, lv=Lv)

    out = pl.pallas_call(
        kernel,
        out_shape=jax.ShapeDtypeStruct((N, Cout, Lv), jnp.float32),
        grid_spec=pltpu.PrefetchScalarGridSpec(
            num_scalar_prefetch=0,
            grid=(N,),
            in_specs=[
                pl.BlockSpec((1, 4 * Cin, Lp), lambda n: (n, 0, 0)),
                pl.BlockSpec((Cout, 9 * Cin), lambda n: (0, 0)),
                pl.BlockSpec((Cout, 1), lambda n: (0, 0)),
                pl.BlockSpec((Cout, 1), lambda n: (0, 0)),
            ],
            out_specs=pl.BlockSpec((1, Cout, Lv), lambda n: (n, 0, 0)),
        ),
        compiler_params=pltpu.CompilerParams(
            dimension_semantics=("parallel",),        # batch sharded across TCs (v7x)
            vmem_limit_bytes=32 * 1024 * 1024,
        ),
    )(xk, wk, scale2, shift2)

    # (N, Cout, Lv) -> drop padding lanes -> (N, Cout, Ho, Wo); already channel-major NCHW.
    out = out[:, :, : Ho * Wh].reshape(N, Cout, Ho, Wh)[:, :, :, :Wo]
    return out


# ---------------------------------------------------------------------------
# Pure-JAX reference (for correctness check)
# ---------------------------------------------------------------------------
def reference_forward(x, w, b, gamma, beta, run_mean, run_var, eps=1e-5):
    y = jax.lax.conv_general_dilated(
        x, w, window_strides=(1, 1), padding=((1, 1), (1, 1)),
        dimension_numbers=("NCHW", "OIHW", "NCHW"))
    y = y + b[None, :, None, None]
    y = (y - run_mean[None, :, None, None]) / jnp.sqrt(run_var[None, :, None, None] + eps)
    y = y * gamma[None, :, None, None] + beta[None, :, None, None]
    y = jnp.maximum(y, 0.0)
    N, C, Hy, Wy = y.shape
    return y.reshape(N, C, Hy // 2, 2, Wy // 2, 2).max(axis=(3, 5))


if __name__ == "__main__":
    # Module config: MyConvolutionBlock(in_ch=4, out_ch=8, dropout_p=0.1), eval mode.
    N, Cin, Cout, H, W = 2, 4, 8, 16, 16

    key = jax.random.PRNGKey(0)
    kx, kw, kb, kg, kbe, km, kv = jax.random.split(key, 7)
    x = jax.random.normal(kx, (N, Cin, H, W), dtype=jnp.float32)
    w = jax.random.normal(kw, (Cout, Cin, 3, 3), dtype=jnp.float32) * 0.1   # Conv2d weight
    b = jax.random.normal(kb, (Cout,), dtype=jnp.float32) * 0.1             # Conv2d bias
    gamma = 1.0 + 0.1 * jax.random.normal(kg, (Cout,), dtype=jnp.float32)   # BN weight
    beta = 0.1 * jax.random.normal(kbe, (Cout,), dtype=jnp.float32)         # BN bias
    run_mean = 0.1 * jax.random.normal(km, (Cout,), dtype=jnp.float32)      # BN running_mean
    run_var = jax.random.uniform(kv, (Cout,), dtype=jnp.float32,
                                 minval=0.5, maxval=1.5)                    # BN running_var

    out = conv_block_forward(x, w, b, gamma, beta, run_mean, run_var)
    out = jax.block_until_ready(out)

    ref = jax.block_until_ready(reference_forward(x, w, b, gamma, beta, run_mean, run_var))
    assert out.shape == (N, Cout, H // 2, W // 2), out.shape
    # bf16 conv operands with f32 accumulation vs. pure-f32 reference -> loose tolerance.
    assert jnp.allclose(out, ref, atol=5e-2, rtol=5e-2), float(jnp.max(jnp.abs(out - ref)))

    print("KERNEL_OK")
</pallas_src>

<mosaic_0001>
module attributes {stable_mosaic.version = 11 : i64} {
  func.func @_conv_block_kernel(%arg0: i32, %arg1: memref<1x16x256xbf16, #tpu.memory_space<vmem>>, %arg2: memref<8x36xbf16, #tpu.memory_space<vmem>>, %arg3: memref<8x1xf32, #tpu.memory_space<vmem>>, %arg4: memref<8x1xf32, #tpu.memory_space<vmem>>, %arg5: memref<1x8x128xf32, #tpu.memory_space<vmem>>) attributes {dimension_semantics = [#tpu.dimension_semantics<parallel>], iteration_bounds = array<i64: 2>, scalar_prefetch = 0 : i64, scratch_operands = 0 : i64, tpu.core_type = #tpu.core_type<tc>, window_params = [{transform_indices = @transform_0, window_bounds = array<i64: 1, 16, 256>}, {pipeline_mode = #tpu.pipeline_mode<synchronous>, transform_indices = @transform_1, window_bounds = array<i64: 8, 36>}, {pipeline_mode = #tpu.pipeline_mode<synchronous>, transform_indices = @transform_2, window_bounds = array<i64: 8, 1>}, {pipeline_mode = #tpu.pipeline_mode<synchronous>, transform_indices = @transform_3, window_bounds = array<i64: 8, 1>}, {transform_indices = @transform_4, window_bounds = array<i64: 1, 8, 128>}]} {
    %c0 = arith.constant 0 : index
    %c0_0 = arith.constant 0 : index
    %c0_1 = arith.constant 0 : index
    %0 = vector.load %arg1[%c0, %c0_0, %c0_1] : memref<1x16x256xbf16, #tpu.memory_space<vmem>>, vector<1x16x256xbf16>
    %1 = vector.shape_cast %0 : vector<1x16x256xbf16> to vector<16x256xbf16>
    %2 = vector.extract_strided_slice %1 {offsets = [0, 0], sizes = [4, 128], strides = [1, 1]} : vector<16x256xbf16> to vector<4x128xbf16>
    %3 = vector.extract_strided_slice %1 {offsets = [4, 0], sizes = [4, 128], strides = [1, 1]} : vector<16x256xbf16> to vector<4x128xbf16>
    %4 = vector.extract_strided_slice %1 {offsets = [0, 1], sizes = [4, 128], strides = [1, 1]} : vector<16x256xbf16> to vector<4x128xbf16>
    %5 = vector.extract_strided_slice %1 {offsets = [8, 0], sizes = [4, 128], strides = [1, 1]} : vector<16x256xbf16> to vector<4x128xbf16>
    %6 = vector.extract_strided_slice %1 {offsets = [12, 0], sizes = [4, 128], strides = [1, 1]} : vector<16x256xbf16> to vector<4x128xbf16>
    %7 = vector.extract_strided_slice %1 {offsets = [8, 1], sizes = [4, 128], strides = [1, 1]} : vector<16x256xbf16> to vector<4x128xbf16>
    %8 = vector.extract_strided_slice %1 {offsets = [0, 9], sizes = [4, 128], strides = [1, 1]} : vector<16x256xbf16> to vector<4x128xbf16>
    %9 = vector.extract_strided_slice %1 {offsets = [4, 9], sizes = [4, 128], strides = [1, 1]} : vector<16x256xbf16> to vector<4x128xbf16>
    %10 = vector.extract_strided_slice %1 {offsets = [0, 10], sizes = [4, 128], strides = [1, 1]} : vector<16x256xbf16> to vector<4x128xbf16>
    %11 = tpu.concatenate %2, %3, %4, %5, %6, %7, %8, %9, %10 in 0 : vector<4x128xbf16>, vector<4x128xbf16>, vector<4x128xbf16>, vector<4x128xbf16>, vector<4x128xbf16>, vector<4x128xbf16>, vector<4x128xbf16>, vector<4x128xbf16>, vector<4x128xbf16> -> vector<36x128xbf16>
    %12 = vector.extract_strided_slice %1 {offsets = [4, 0], sizes = [4, 128], strides = [1, 1]} : vector<16x256xbf16> to vector<4x128xbf16>
    %13 = vector.extract_strided_slice %1 {offsets = [0, 1], sizes = [4, 128], strides = [1, 1]} : vector<16x256xbf16> to vector<4x128xbf16>
    %14 = vector.extract_strided_slice %1 {offsets = [4, 1], sizes = [4, 128], strides = [1, 1]} : vector<16x256xbf16> to vector<4x128xbf16>
    %15 = vector.extract_strided_slice %1 {offsets = [12, 0], sizes = [4, 128], strides = [1, 1]} : vector<16x256xbf16> to vector<4x128xbf16>
    %16 = vector.extract_strided_slice %1 {offsets = [8, 1], sizes = [4, 128], strides = [1, 1]} : vector<16x256xbf16> to vector<4x128xbf16>
    %17 = vector.extract_strided_slice %1 {offsets = [12, 1], sizes = [4, 128], strides = [1, 1]} : vector<16x256xbf16> to vector<4x128xbf16>
    %18 = vector.extract_strided_slice %1 {offsets = [4, 9], sizes = [4, 128], strides = [1, 1]} : vector<16x256xbf16> to vector<4x128xbf16>
    %19 = vector.extract_strided_slice %1 {offsets = [0, 10], sizes = [4, 128], strides = [1, 1]} : vector<16x256xbf16> to vector<4x128xbf16>
    %20 = vector.extract_strided_slice %1 {offsets = [4, 10], sizes = [4, 128], strides = [1, 1]} : vector<16x256xbf16> to vector<4x128xbf16>
    %21 = tpu.concatenate %12, %13, %14, %15, %16, %17, %18, %19, %20 in 0 : vector<4x128xbf16>, vector<4x128xbf16>, vector<4x128xbf16>, vector<4x128xbf16>, vector<4x128xbf16>, vector<4x128xbf16>, vector<4x128xbf16>, vector<4x128xbf16>, vector<4x128xbf16> -> vector<36x128xbf16>
    %22 = vector.extract_strided_slice %1 {offsets = [8, 0], sizes = [4, 128], strides = [1, 1]} : vector<16x256xbf16> to vector<4x128xbf16>
    %23 = vector.extract_strided_slice %1 {offsets = [12, 0], sizes = [4, 128], strides = [1, 1]} : vector<16x256xbf16> to vector<4x128xbf16>
    %24 = vector.extract_strided_slice %1 {offsets = [8, 1], sizes = [4, 128], strides = [1, 1]} : vector<16x256xbf16> to vector<4x128xbf16>
    %25 = vector.extract_strided_slice %1 {offsets = [0, 9], sizes = [4, 128], strides = [1, 1]} : vector<16x256xbf16> to vector<4x128xbf16>
    %26 = vector.extract_strided_slice %1 {offsets = [4, 9], sizes = [4, 128], strides = [1, 1]} : vector<16x256xbf16> to vector<4x128xbf16>
    %27 = vector.extract_strided_slice %1 {offsets = [0, 10], sizes = [4, 128], strides = [1, 1]} : vector<16x256xbf16> to vector<4x128xbf16>
    %28 = vector.extract_strided_slice %1 {offsets = [8, 9], sizes = [4, 128], strides = [1, 1]} : vector<16x256xbf16> to vector<4x128xbf16>
    %29 = vector.extract_strided_slice %1 {offsets = [12, 9], sizes = [4, 128], strides = [1, 1]} : vector<16x256xbf16> to vector<4x128xbf16>
    %30 = vector.extract_strided_slice %1 {offsets = [8, 10], sizes = [4, 128], strides = [1, 1]} : vector<16x256xbf16> to vector<4x128xbf16>
    %31 = tpu.concatenate %22, %23, %24, %25, %26, %27, %28, %29, %30 in 0 : vector<4x128xbf16>, vector<4x128xbf16>, vector<4x128xbf16>, vector<4x128xbf16>, vector<4x128xbf16>, vector<4x128xbf16>, vector<4x128xbf16>, vector<4x128xbf16>, vector<4x128xbf16> -> vector<36x128xbf16>
    %32 = vector.extract_strided_slice %1 {offsets = [12, 0], sizes = [4, 128], strides = [1, 1]} : vector<16x256xbf16> to vector<4x128xbf16>
    %33 = vector.extract_strided_slice %1 {offsets = [8, 1], sizes = [4, 128], strides = [1, 1]} : vector<16x256xbf16> to vector<4x128xbf16>
    %34 = vector.extract_strided_slice %1 {offsets = [12, 1], sizes = [4, 128], strides = [1, 1]} : vector<16x256xbf16> to vector<4x128xbf16>
    %35 = vector.extract_strided_slice %1 {offsets = [4, 9], sizes = [4, 128], strides = [1, 1]} : vector<16x256xbf16> to vector<4x128xbf16>
    %36 = vector.extract_strided_slice %1 {offsets = [0, 10], sizes = [4, 128], strides = [1, 1]} : vector<16x256xbf16> to vector<4x128xbf16>
    %37 = vector.extract_strided_slice %1 {offsets = [4, 10], sizes = [4, 128], strides = [1, 1]} : vector<16x256xbf16> to vector<4x128xbf16>
    %38 = vector.extract_strided_slice %1 {offsets = [12, 9], sizes = [4, 128], strides = [1, 1]} : vector<16x256xbf16> to vector<4x128xbf16>
    %39 = vector.extract_strided_slice %1 {offsets = [8, 10], sizes = [4, 128], strides = [1, 1]} : vector<16x256xbf16> to vector<4x128xbf16>
    %40 = vector.extract_strided_slice %1 {offsets = [12, 10], sizes = [4, 128], strides = [1, 1]} : vector<16x256xbf16> to vector<4x128xbf16>
    %41 = tpu.concatenate %32, %33, %34, %35, %36, %37, %38, %39, %40 in 0 : vector<4x128xbf16>, vector<4x128xbf16>, vector<4x128xbf16>, vector<4x128xbf16>, vector<4x128xbf16>, vector<4x128xbf16>, vector<4x128xbf16>, vector<4x128xbf16>, vector<4x128xbf16> -> vector<36x128xbf16>
    %42 = tpu.concatenate %11, %21, %31, %41 in 1 : vector<36x128xbf16>, vector<36x128xbf16>, vector<36x128xbf16>, vector<36x128xbf16> -> vector<36x512xbf16>
    %c0_2 = arith.constant 0 : index
    %c0_3 = arith.constant 0 : index
    %43 = vector.load %arg2[%c0_2, %c0_3] : memref<8x36xbf16, #tpu.memory_space<vmem>>, vector<8x36xbf16>
    %cst = arith.constant dense<0.000000e+00> : vector<8x512xf32>
    %44 = tpu.matmul %43, %42, %cst {dimension_numbers = #tpu.dot_dimension_numbers<[1], [0], [0], [1], [0, 0, 1, 1], [], []>} : vector<8x36xbf16>, vector<36x512xbf16>, vector<8x512xf32> -> vector<8x512xf32>
    %c0_4 = arith.constant 0 : index
    %c0_5 = arith.constant 0 : index
    %45 = vector.load %arg3[%c0_4, %c0_5] : memref<8x1xf32, #tpu.memory_space<vmem>>, vector<8x1xf32>
    %46 = vector.broadcast %45 : vector<8x1xf32> to vector<8x512xf32>
    %47 = arith.mulf %44, %46 : vector<8x512xf32>
    %c0_6 = arith.constant 0 : index
    %c0_7 = arith.constant 0 : index
    %48 = vector.load %arg4[%c0_6, %c0_7] : memref<8x1xf32, #tpu.memory_space<vmem>>, vector<8x1xf32>
    %49 = vector.broadcast %48 : vector<8x1xf32> to vector<8x512xf32>
    %50 = arith.addf %47, %49 : vector<8x512xf32>
    %cst_8 = arith.constant 0.000000e+00 : f32
    %51 = vector.broadcast %cst_8 : f32 to vector<8x512xf32>
    %52 = arith.maximumf %50, %51 : vector<8x512xf32>
    %53 = vector.extract_strided_slice %52 {offsets = [0, 0], sizes = [8, 128], strides = [1, 1]} : vector<8x512xf32> to vector<8x128xf32>
    %54 = vector.extract_strided_slice %52 {offsets = [0, 128], sizes = [8, 128], strides = [1, 1]} : vector<8x512xf32> to vector<8x128xf32>
    %55 = arith.maximumf %53, %54 : vector<8x128xf32>
    %56 = vector.extract_strided_slice %52 {offsets = [0, 256], sizes = [8, 128], strides = [1, 1]} : vector<8x512xf32> to vector<8x128xf32>
    %57 = vector.extract_strided_slice %52 {offsets = [0, 384], sizes = [8, 128], strides = [1, 1]} : vector<8x512xf32> to vector<8x128xf32>
    %58 = arith.maximumf %56, %57 : vector<8x128xf32>
    %59 = arith.maximumf %55, %58 : vector<8x128xf32>
    %c0_9 = arith.constant 0 : index
    %c0_10 = arith.constant 0 : index
    %c0_11 = arith.constant 0 : index
    %60 = vector.load %arg5[%c0_9, %c0_10, %c0_11] : memref<1x8x128xf32, #tpu.memory_space<vmem>>, vector<1x8x128xf32>
    %61 = vector.shape_cast %60 : vector<1x8x128xf32> to vector<8x128xf32>
    %62 = vector.shape_cast %59 : vector<8x128xf32> to vector<1x8x128xf32>
    tpu.vector_store %arg5[%c0_9, %c0_10, %c0_11], %62 {strides = array<i32>} : memref<1x8x128xf32, #tpu.memory_space<vmem>>, vector<1x8x128xf32>,
    return
  }
  func.func @transform_0(%arg0: i32) -> (i32, i32, i32) {
    %c0_i32 = arith.constant 0 : i32
    %c0_i32_0 = arith.constant 0 : i32
    %c0_i32_1 = arith.constant 0 : i32
    return %arg0, %c0_i32, %c0_i32_0 : i32, i32, i32
  }
  func.func @transform_1(%arg0: i32) -> (i32, i32) {
    %c0_i32 = arith.constant 0 : i32
    %c0_i32_0 = arith.constant 0 : i32
    %c0_i32_1 = arith.constant 0 : i32
    return %c0_i32, %c0_i32_0 : i32, i32
  }
  func.func @transform_2(%arg0: i32) -> (i32, i32) {
    %c0_i32 = arith.constant 0 : i32
    %c0_i32_0 = arith.constant 0 : i32
    %c0_i32_1 = arith.constant 0 : i32
    return %c0_i32, %c0_i32_0 : i32, i32
  }
  func.func @transform_3(%arg0: i32) -> (i32, i32) {
    %c0_i32 = arith.constant 0 : i32
    %c0_i32_0 = arith.constant 0 : i32
    %c0_i32_1 = arith.constant 0 : i32
    return %c0_i32, %c0_i32_0 : i32, i32
  }
  func.func @transform_4(%arg0: i32) -> (i32, i32, i32) {
    %c0_i32 = arith.constant 0 : i32
    %c0_i32_0 = arith.constant 0 : i32
    %c0_i32_1 = arith.constant 0 : i32
    return %arg0, %c0_i32, %c0_i32_0 : i32, i32, i32
  }
}

</mosaic_0001>

<llo_original>
// kernel: tpu_custom_call.1
$region0: #{tpu_custom_call.1}
  #allocation0 [shape = 'u32[]', space=smem, size = 0x4, offset = 0x4, fixed_abs, tag = 'smem constant byte address 0x4 - core index']
  #allocation1 [shape = 'u32[144,128]{1,0:T(1,128)}', space=vmem, size = 0x12000, scoped, tag = 'internal scratch']
  %s0 = inlined_call_operand.hbm [shape: bf16[2,16,256], index: 0, kind: input, shape index: {}]
  %s1 = inlined_call_operand.vmem [shape: bf16[8,36], index: 1, kind: input, shape index: {}]
  %s2 = inlined_call_operand.vmem [shape: f32[8,1], index: 2, kind: input, shape index: {}]
  %s3 = inlined_call_operand.vmem [shape: f32[8,1], index: 3, kind: input, shape index: {}]
  %s4 = inlined_call_operand.hbm [shape: f32[2,8,128], index: 4, kind: output, shape index: {}]
  %s5 = sld [smem:[#allocation0]]
  $region53: #{tpu_custom_call.1} parent=0
    _
  %s7 = ssub.s32 1, %s5
  %s8 = scalar_select 0, %s7, %s5
  $region1: #{tpu_custom_call.1} parent=0
    #allocation2 [shape = 'u8[16384]{0}', space=vmem, size = 0x4000, scoped, tag = 'input window, operand 0']
    #allocation3 [shape = 's32[2]{0}', space=sflag, size = 0x8, scoped, tag = 'scoped memory for tpu_custom_call.1']
    #allocation4 [shape = 's32[2]{0}', space=sflag, size = 0x8, scoped, tag = 'scoped memory for tpu_custom_call.1']
    #allocation5 [shape = 'u8[8192]{0}', space=vmem, size = 0x2000, scoped, tag = 'output window, operand 0']
    %9 = vsyncpa [#allocation3], 0
    %s10 = scalar_lea.sflag [#allocation3], 1
    %11 = vsyncpa %s10, 0
    %12 = vsyncpa [#allocation4], 0
    %s13 = scalar_lea.sflag [#allocation4], 1
    %14 = vsyncpa %s13, 0
    loop: start=0, step=1, limit=4
    $region2: #{tpu_custom_call.1} parent=1 // loop_pre_header
      _
    $region3: #{tpu_custom_call.1} parent=1 // loop_header
      %s16 = sphi 0, %s20
      %p17 = scmp.ge.s32.totalorder %s16, 4
      %s26 = sphi 0, %s28
      %s29 = sphi 0, %s26
      %s30 = sphi 0, %s29
      %s46 = sphi 0, %s30
      %s50 = sphi 0, %s50
      %s52 = sphi 0, %s50
      %s53 = sphi 0, %s52
      %s67 = sphi 0, %s53
      %s71 = sphi 0, %s71
      %s73 = sphi 0, %s71
      %s74 = sphi 0, %s73
      %s88 = sphi 0, %s74
      %s92 = sphi 0, %s92
      %s94 = sphi 0, %s92
      %s95 = sphi 0, %s94
      %s109 = sphi 0, %s95
      %s115 = sphi 0, %s117
      %s118 = sphi 0, %s115
      %s119 = sphi 0, %s118
      %s135 = sphi 0, %s119
    $region4: #{tpu_custom_call.1} parent=1 // loop_header_branch
      %19 = sbr.rel (%p17) target = $region8
    $region5: #{tpu_custom_call.1} parent=1 // loop_body
      %s21 = ssub.s32 %s16, 1
      %s22 = ssub.s32 %s16, 2
      %s23 = sadd.s32 %s16, 1
      %s24 = ssub.s32 %s16, %s23
      %p25 = scmp.eq.s32.totalorder %s24, 0
      %s27 = sadd.s32 %s26, 1
      %s28 = scalar_select %p25, %s26, %s27
      %p31 = pneg %p25
      %p32 = scmp.eq.s32.totalorder %s16, 1
      %p33 = por %p31, %p32
      %p34 = scmp.ne.s32.totalorder %s26, %s29
      %p35 = scmp.eq.s32.totalorder %s16, 0
      %p36 = por %p34, %p35
      %p37 = scmp.ne.s32.totalorder %s26, %s29
      %p38 = scmp.eq.s32.totalorder %s21, 1
      %p39 = por %p37, %p38
      %p40 = scmp.ne.s32.totalorder %s29, %s30
      %p41 = scmp.eq.s32.totalorder %s21, 0
      %p42 = por %p40, %p41
      %p43 = scmp.ne.s32.totalorder %s29, %s30
      %p44 = scmp.eq.s32.totalorder %s22, 1
      %p45 = por %p43, %p44
      %p47 = scmp.ne.s32.totalorder %s30, %s46
      %p48 = scmp.eq.s32.totalorder %s22, 0
      %p49 = por %p47, %p48
      %s51 = sadd.s32 %s50, 1
      %p54 = scmp.eq.s32.totalorder %s16, 1
      %p55 = scmp.ne.s32.totalorder %s50, %s52
      %p56 = scmp.eq.s32.totalorder %s16, 0
      %p57 = por %p55, %p56
      %p58 = scmp.ne.s32.totalorder %s50, %s52
      %p59 = scmp.eq.s32.totalorder %s21, 1
      %p60 = por %p58, %p59
      %p61 = scmp.ne.s32.totalorder %s52, %s53
      %p62 = scmp.eq.s32.totalorder %s21, 0
      %p63 = por %p61, %p62
      %p64 = scmp.ne.s32.totalorder %s52, %s53
      %p65 = scmp.eq.s32.totalorder %s22, 1
      %p66 = por %p64, %p65
      %p68 = scmp.ne.s32.totalorder %s53, %s67
      %p69 = scmp.eq.s32.totalorder %s22, 0
      %p70 = por %p68, %p69
      %s72 = sadd.s32 %s71, 1
      %p75 = scmp.eq.s32.totalorder %s16, 1
      %p76 = scmp.ne.s32.totalorder %s71, %s73
      %p77 = scmp.eq.s32.totalorder %s16, 0
      %p78 = por %p76, %p77
      %p79 = scmp.ne.s32.totalorder %s71, %s73
      %p80 = scmp.eq.s32.totalorder %s21, 1
      %p81 = por %p79, %p80
      %p82 = scmp.ne.s32.totalorder %s73, %s74
      %p83 = scmp.eq.s32.totalorder %s21, 0
      %p84 = por %p82, %p83
      %p85 = scmp.ne.s32.totalorder %s73, %s74
      %p86 = scmp.eq.s32.totalorder %s22, 1
      %p87 = por %p85, %p86
      %p89 = scmp.ne.s32.totalorder %s74, %s88
      %p90 = scmp.eq.s32.totalorder %s22, 0
      %p91 = por %p89, %p90
      %s93 = sadd.s32 %s92, 1
      %p96 = scmp.eq.s32.totalorder %s16, 1
      %p97 = scmp.ne.s32.totalorder %s92, %s94
      %p98 = scmp.eq.s32.totalorder %s16, 0
      %p99 = por %p97, %p98
      %p100 = scmp.ne.s32.totalorder %s92, %s94
      %p101 = scmp.eq.s32.totalorder %s21, 1
      %p102 = por %p100, %p101
      %p103 = scmp.ne.s32.totalorder %s94, %s95
      %p104 = scmp.eq.s32.totalorder %s21, 0
      %p105 = por %p103, %p104
      %p106 = scmp.ne.s32.totalorder %s94, %s95
      %p107 = scmp.eq.s32.totalorder %s22, 1
      %p108 = por %p106, %p107
      %p110 = scmp.ne.s32.totalorder %s95, %s109
      %p111 = scmp.eq.s32.totalorder %s22, 0
      %p112 = por %p110, %p111
      %s113 = ssub.s32 %s16, %s23
      %p114 = scmp.eq.s32.totalorder %s113, 0
      %s116 = sadd.s32 %s115, 1
      %s117 = scalar_select %p114, %s115, %s116
      %p120 = pneg %p114
      %p121 = scmp.eq.s32.totalorder %s16, 1
      %p122 = por %p120, %p121
      %p123 = scmp.ne.s32.totalorder %s115, %s118
      %p124 = scmp.eq.s32.totalorder %s16, 0
      %p125 = por %p123, %p124
      %p126 = scmp.ne.s32.totalorder %s115, %s118
      %p127 = scmp.eq.s32.totalorder %s21, 1
      %p128 = por %p126, %p127
      %p129 = scmp.ne.s32.totalorder %s118, %s119
      %p130 = scmp.eq.s32.totalorder %s21, 0
      %p131 = por %p129, %p130
      %p132 = scmp.ne.s32.totalorder %s118, %s119
      %p133 = scmp.eq.s32.totalorder %s22, 1
      %p134 = por %p132, %p133
      %p136 = scmp.ne.s32.totalorder %s119, %s135
      %p137 = scmp.eq.s32.totalorder %s22, 0
      %p138 = por %p136, %p137
      %p139 = scmp.le.s32.totalorder 1, %s16
      %p140 = scmp.lt.s32.totalorder %s16, 3
      %p141 = pnand %p139, %p140
      %p142 = pneg %p141
      // Predicated region
      $region9: #{tpu_custom_call.1} parent=5 // pred_check
        _
      $region10: #{tpu_custom_call.1} parent=5 // pred_check_branch
        %144 = sbr.rel (%p141) target = $region12
      $region11: #{tpu_custom_call.1} parent=5 // pred_region
        %s145 = ssub.s32 %s16, 1
        // Predicated region
        $region13: #{tpu_custom_call.1} parent=11 // pred_check
          %p146 = pneg %p63
        $region14: #{tpu_custom_call.1} parent=11 // pred_check_branch
          %148 = sbr.rel (%p146) target = $region16
        $region15: #{tpu_custom_call.1} parent=11 // pred_region
          _
        $region16: #{tpu_custom_call.1} parent=11 // pred_fallthru
          _
        // Predicated region
        $region17: #{tpu_custom_call.1} parent=11 // pred_check
          %p149 = pneg %p84
        $region18: #{tpu_custom_call.1} parent=11 // pred_check_branch
          %151 = sbr.rel (%p149) target = $region20
        $region19: #{tpu_custom_call.1} parent=11 // pred_region
          _
        $region20: #{tpu_custom_call.1} parent=11 // pred_fallthru
          _
        // Predicated region
        $region21: #{tpu_custom_call.1} parent=11 // pred_check
          %p152 = pneg %p105
        $region22: #{tpu_custom_call.1} parent=11 // pred_check_branch
          %154 = sbr.rel (%p152) target = $region24
        $region23: #{tpu_custom_call.1} parent=11 // pred_region
          _
        $region24: #{tpu_custom_call.1} parent=11 // pred_fallthru
          _
      $region12: #{tpu_custom_call.1} parent=5 // pred_fallthru
        _
      %p155 = scmp.lt.s32.totalorder %s16, 2
      // Predicated region
      $region25: #{tpu_custom_call.1} parent=5 // pred_check
        %p156 = pneg %p155
      $region26: #{tpu_custom_call.1} parent=5 // pred_check_branch
        %158 = sbr.rel (%p156) target = $region28
      $region27: #{tpu_custom_call.1} parent=5 // pred_region
        // Predicated region
        $region29: #{tpu_custom_call.1} parent=27 // pred_check
          %p159 = pneg %p36
        $region30: #{tpu_custom_call.1} parent=27 // pred_check_branch
          %161 = sbr.rel (%p159) target = $region32
        $region31: #{tpu_custom_call.1} parent=27 // pred_region
          %s162 = sand.u32 %s26, 1
          %s163 = scalar_lea.sflag [#allocation3], %s162
          %s164 = sand.u32 %s26, 1
          %s165 = smul.addr %s164, 16
          %s166 = scalar_lea.vmem [#allocation2], %s165
          %s168 = ssub.s32 256, 256
          %169 = vsyncadd %s163, %s168
          %s170 = smul.addr %s16, 4
          %s171 = smul.addr %s170, 64
          %s172 = scalar_lea.hbm %s0, %s171
          %s173 = sshll.u32 %s166, 4
          %s174 = int_to_ptr.vmem [resolvable:$true] %s173
          %179 = dma.hbm_to_vmem [thread:$0]  %s172, 256, %s174, %s163, 128, 128, 8
        $region32: #{tpu_custom_call.1} parent=27 // pred_fallthru
          _
      $region28: #{tpu_custom_call.1} parent=5 // pred_fallthru
        _
      %p180 = scmp.le.s32.totalorder 1, %s16
      %p181 = scmp.lt.s32.totalorder %s16, 3
      %p182 = pnand %p180, %p181
      %p183 = pneg %p182
      // Predicated region
      $region33: #{tpu_custom_call.1} parent=5 // pred_check
        _
      $region34: #{tpu_custom_call.1} parent=5 // pred_check_branch
        %185 = sbr.rel (%p182) target = $region36
      $region35: #{tpu_custom_call.1} parent=5 // pred_region
        %s186 = ssub.s32 %s16, 1
        %s187 = sand.u32 %s29, 1
        %s188 = scalar_lea.sflag [#allocation3], %s187
        %s189 = sand.u32 %s29, 1
        %s190 = smul.addr %s189, 16
        %s191 = scalar_lea.vmem [#allocation2], %s190
        // Predicated region
        $region37: #{tpu_custom_call.1} parent=35 // pred_check
          %p192 = pneg %p42
        $region38: #{tpu_custom_call.1} parent=35 // pred_check_branch
          %194 = sbr.rel (%p192) target = $region40
        $region39: #{tpu_custom_call.1} parent=35 // pred_region
          %195 = dma.done %s188, 256
        $region40: #{tpu_custom_call.1} parent=35 // pred_fallthru
          _
        %s196 = sand.u32 %s29, 1
        %s197 = scalar_lea.sflag [#allocation3], %s196
        %s198 = sand.u32 %s29, 1
        %s199 = smul.addr %s198, 16
        %s200 = scalar_lea.vmem [#allocation2], %s199
        %p201 = pneg %p42
        %p202 = pneg %p39
        %p203 = pneg %p63
        %p204 = pneg %p60
        %p205 = pneg %p84
        %p206 = pneg %p81
        %p207 = pneg %p105
        %p208 = pneg %p102
        %p209 = pneg %p131
        %p210 = pneg %p128
        %s211 = sand.u32 %s118, 1
        %s212 = scalar_lea.sflag [#allocation4], %s211
        %s213 = sand.u32 %s118, 1
        %s214 = smul.addr %s213, 8
        %s215 = scalar_lea.vmem [#allocation5], %s214
        %v217 = vld [vmem:[%s191] sm:$0xff]
        %v218 = vld [vmem:[%s191 + $0x8] sm:$0xff]
        %v220 = vunpack.c.l.b16 %v217
        %v221 = vunpack.c.h.b16 %v217
        %v222 = vpack.c.b16 %v220, %v220
        %v223 = vpack.c.b16 %v221, %v221
        %224 = vrot.lane.b32.xlu0 %v222, 127
        %v225 = vpop.permute.xlu0 %224
        %226 = vrot.lane.b32.xlu0 %v223, 127
        %v227 = vpop.permute.xlu0 %226
        %vm228 = vcmask 1039360
        %v229 = vsel %vm228, %v225, %v227
        %v231 = vunpack.c.l.b16 %v218
        %v232 = vpack.c.b16 %v231, %v231
        %v233 = vrot.slane %v232, 2
        %v234 = vunpack.c.h.b16 %v218
        %v235 = vpack.c.b16 %v234, %v234
        %v236 = vrot.slane %v232, 6
        %v237 = vrot.slane %v235, 6
        %238 = vrot.lane.b32.xlu0 %v236, 127
        %v239 = vpop.permute.xlu0 %238
        %240 = vrot.lane.b32.xlu0 %v237, 127
        %v241 = vpop.permute.xlu0 %240
        %v242 = vsel %vm228, %v239, %v241
        %243 = vrot.lane.b32.xlu0 %v222, 119
        %v244 = vpop.permute.xlu0 %243
        %245 = vrot.lane.b32.xlu0 %v223, 119
        %v246 = vpop.permute.xlu0 %245
        %vm247 = vcmask 973824
        %v248 = vsel %vm247, %v244, %v246
        %249 = vrot.lane.b32.xlu0 %v222, 118
        %v250 = vpop.permute.xlu0 %249
        %251 = vrot.lane.b32.xlu0 %v223, 118
        %v252 = vpop.permute.xlu0 %251
        %vm253 = vcmask 965632
        %v254 = vsel %vm253, %v250, %v252
        %vm255 = vcmask 1041408
        %vm257 = vcmask 1043456
        %v259 = vsel %vm257, %v217, %v229
        %vm260 = vcmask 1045504
        %v262 = vsel %vm260, %v259, %v233
        %v265 = vsel %vm255, %v233, %v242
        %v267 = vsel %vm257, %v265, %v248
        %v268 = vsel %vm260, %v267, %v248
        %v270 = vrot.slane %v222, 2
        %v271 = vrot.slane %v222, 6
        %v272 = vrot.slane %v223, 6
        %273 = vrot.lane.b32.xlu0 %v271, 127
        %v274 = vpop.permute.xlu0 %273
        %275 = vrot.lane.b32.xlu0 %v272, 127
        %v276 = vpop.permute.xlu0 %275
        %v277 = vsel %vm228, %v274, %v276
        %278 = vrot.lane.b32.xlu0 %v232, 127
        %v279 = vpop.permute.xlu0 %278
        %280 = vrot.lane.b32.xlu0 %v235, 127
        %v281 = vpop.permute.xlu0 %280
        %v282 = vsel %vm228, %v279, %v281
        %283 = vrot.lane.b32.xlu0 %v271, 119
        %v284 = vpop.permute.xlu0 %283
        %285 = vrot.lane.b32.xlu0 %v272, 119
        %v286 = vpop.permute.xlu0 %285
        %v287 = vsel %vm247, %v284, %v286
        %v288 = vrot.slane %v223, 2
        %289 = vrot.lane.b32.xlu0 %v270, 118
        %v290 = vpop.permute.xlu0 %289
        %291 = vrot.lane.b32.xlu0 %v288, 118
        %v292 = vpop.permute.xlu0 %291
        %v293 = vsel %vm253, %v290, %v292
        %v296 = vsel %vm255, %v270, %v277
        %v297 = vsel %vm257, %v296, %v277
        %v299 = vsel %vm260, %v297, %v232
        %v303 = vsel %vm257, %v282, %v287
        %v305 = vsel %vm260, %v303, %v293
        %307 = vrot.lane.b32.xlu0 %v270, 119
        %v308 = vpop.permute.xlu0 %307
        %309 = vrot.lane.b32.xlu0 %v288, 119
        %v310 = vpop.permute.xlu0 %309
        %v311 = vsel %vm247, %v308, %v310
        %312 = vrot.lane.b32.xlu0 %v271, 118
        %v313 = vpop.permute.xlu0 %312
        %314 = vrot.lane.b32.xlu0 %v272, 118
        %v315 = vpop.permute.xlu0 %314
        %v316 = vsel %vm253, %v313, %v315
        %317 = vrot.lane.b32.xlu0 %v232, 119
        %v318 = vpop.permute.xlu0 %317
        %319 = vrot.lane.b32.xlu0 %v235, 119
        %v320 = vpop.permute.xlu0 %319
        %v321 = vsel %vm247, %v318, %v320
        %322 = vrot.lane.b32.xlu0 %v232, 118
        %v323 = vpop.permute.xlu0 %322
        %324 = vrot.lane.b32.xlu0 %v235, 118
        %v325 = vpop.permute.xlu0 %324
        %v326 = vsel %vm253, %v323, %v325
        %v328 = vsel %vm257, %v218, %v282
        %v330 = vsel %vm260, %v328, %v311
        %v333 = vsel %vm255, %v311, %v316
        %v335 = vsel %vm257, %v333, %v321
        %v336 = vsel %vm260, %v335, %v321
        %338 = vrot.lane.b32.xlu0 %v236, 119
        %v339 = vpop.permute.xlu0 %338
        %340 = vrot.lane.b32.xlu0 %v237, 119
        %v341 = vpop.permute.xlu0 %340
        %v342 = vsel %vm247, %v339, %v341
        %v343 = vrot.slane %v235, 2
        %344 = vrot.lane.b32.xlu0 %v233, 118
        %v345 = vpop.permute.xlu0 %344
        %346 = vrot.lane.b32.xlu0 %v343, 118
        %v347 = vpop.permute.xlu0 %346
        %v348 = vsel %vm253, %v345, %v347
        %v349 = vsel %vm257, %v265, %v242
        %v350 = vsel %vm260, %v349, %v248
        %v354 = vsel %vm257, %v254, %v342
        %v356 = vsel %vm260, %v354, %v348
        %v358 = vld [vmem:[%s1] sm:$0xf]
        %vm359 = vcmask 293888
        %v361 = vsel %vm359, %v358, 0
        %v363 = vsel %vm255, %v254, 0
        %v365 = vsel %vm255, %v293, 0
        %v368 = vsel %vm255, %v326, 0
        %v370 = vsel %vm255, %v348, 0
        %372 = vmatprep.subr.bf16.mxu0 %v299
        %373 = vmatpush1.bf16.msra.mxu0 %v262
        %374 = vmatprep.subr.bf16.mxu0 %v305
        %375 = vmatpush1.bf16.msra.mxu0 %v268
        %376 = vmatprep.subr.bf16.mxu0 %v365
        %377 = vmatpush1.bf16.msra.mxu0 %v363
        %378 = vmatprep.subr.bf16.mxu0 0
        %379 = vmatpush1.bf16.msra.mxu0 0
        %380 = vmatprep.subr.bf16.mxu0 0
        %381 = vmatpush1.bf16.msra.mxu0 0
        %382 = vmatprep.subr.bf16.mxu0 0
        %383 = vmatpush1.bf16.msra.mxu0 0
        %384 = vmatprep.subr.bf16.mxu0 0
        %385 = vmatpush1.bf16.msra.mxu0 0
        %386 = vmatprep.subr.bf16.mxu0 0
        %387 = vmatpush1.bf16.msra.mxu0 0
        %388 = vmatprep.subr.bf16.mxu0 0
        %389 = vmatpush1.bf16.msra.mxu0 0
        %390 = vmatprep.subr.bf16.mxu0 0
        %391 = vmatpush1.bf16.msra.mxu0 0
        %392 = vmatprep.subr.bf16.mxu0 0
        %393 = vmatpush1.bf16.msra.mxu0 0
        %394 = vmatprep.subr.bf16.mxu0 0
        %395 = vmatpush1.bf16.msra.mxu0 0
        %396 = vmatprep.subr.bf16.mxu0 0
        %397 = vmatpush1.bf16.msra.mxu0 0
        %398 = vmatprep.subr.bf16.mxu0 0
        %399 = vmatpush1.bf16.msra.mxu0 0
        %400 = vmatprep.subr.bf16.mxu0 0
        %401 = vmatpush1.bf16.msra.mxu0 0
        %402 = vmatprep.subr.bf16.mxu0 0
        %403 = vmatpush1.bf16.msra.mxu0 0
        %404 = vmatprep.mubr.bf16.mxu0 0
        %405 = vmatmul.mubr.bf16.gmra.mrb[0].mxu0 %v361
        %v406 = vpop.f32.mrb[0].mxu0
        %v407 = vadd.f32 0.0, %v406
        %v408 = vpop.f32.mrb[0].mxu0
        %v409 = vadd.f32 0.0, %v408
        %v410 = vpop.f32.mrb[0].mxu0
        %v411 = vpop.f32.mrb[0].mxu0
        %412 = vdwg.mxu0
        %413 = vmatprep.subr.bf16.mxu0 %v350
        %414 = vmatpush1.bf16.msra.mxu0 %v330
        %415 = vmatprep.subr.bf16.mxu0 %v356
        %416 = vmatpush1.bf16.msra.mxu0 %v336
        %417 = vmatprep.subr.bf16.mxu0 %v370
        %418 = vmatpush1.bf16.msra.mxu0 %v368
        %419 = vmatprep.subr.bf16.mxu0 0
        %420 = vmatpush1.bf16.msra.mxu0 0
        %421 = vmatprep.subr.bf16.mxu0 0
        %422 = vmatpush1.bf16.msra.mxu0 0
        %423 = vmatprep.subr.bf16.mxu0 0
        %424 = vmatpush1.bf16.msra.mxu0 0
        %425 = vmatprep.subr.bf16.mxu0 0
        %426 = vmatpush1.bf16.msra.mxu0 0
        %427 = vmatprep.subr.bf16.mxu0 0
        %428 = vmatpush1.bf16.msra.mxu0 0
        %429 = vmatprep.subr.bf16.mxu0 0
        %430 = vmatpush1.bf16.msra.mxu0 0
        %431 = vmatprep.subr.bf16.mxu0 0
        %432 = vmatpush1.bf16.msra.mxu0 0
        %433 = vmatprep.subr.bf16.mxu0 0
        %434 = vmatpush1.bf16.msra.mxu0 0
        %435 = vmatprep.subr.bf16.mxu0 0
        %436 = vmatpush1.bf16.msra.mxu0 0
        %437 = vmatprep.subr.bf16.mxu0 0
        %438 = vmatpush1.bf16.msra.mxu0 0
        %439 = vmatprep.subr.bf16.mxu0 0
        %440 = vmatpush1.bf16.msra.mxu0 0
        %441 = vmatprep.subr.bf16.mxu0 0
        %442 = vmatpush1.bf16.msra.mxu0 0
        %443 = vmatprep.subr.bf16.mxu0 0
        %444 = vmatpush1.bf16.msra.mxu0 0
        %445 = vmatprep.mubr.bf16.mxu0 0
        %446 = vmatmul.mubr.bf16.gmra.mrb[0].mxu0 %v361
        %v447 = vpop.f32.mrb[0].mxu0
        %v448 = vadd.f32 0.0, %v447
        %v449 = vpop.f32.mrb[0].mxu0
        %v450 = vadd.f32 0.0, %v449
        %v451 = vpop.f32.mrb[0].mxu0
        %v452 = vpop.f32.mrb[0].mxu0
        %453 = vdwg.mxu0
        %v454 = vld [vmem:[%s2] sm:$0xff]
        %456 = vset.pattern.permute.xlu0 0
        %457 = vperm.xlu0 %456, %v454
        %v458 = vpop.permute.xlu0 %457
        %v460 = vmul.f32 %v407, %v458
        %v461 = vmul.f32 %v409, %v458
        %v462 = vmul.f32 %v448, %v458
        %v463 = vmul.f32 %v450, %v458
        %v464 = vld [vmem:[%s3] sm:$0xff]
        %466 = vset.pattern.permute.xlu0 0
        %467 = vperm.xlu0 %466, %v464
        %v468 = vpop.permute.xlu0 %467
        %v470 = vadd.f32 %v460, %v468
        %v471 = vadd.f32 %v461, %v468
        %v472 = vadd.f32 %v462, %v468
        %v473 = vadd.f32 %v463, %v468
        %v474 = vmax.f32 %v470, 0.0
        %v475 = vmax.f32 %v471, 0.0
        %v476 = vmax.f32 %v472, 0.0
        %v477 = vmax.f32 %v473, 0.0
        %v478 = vmax.f32 %v474, %v475
        %v479 = vmax.f32 %v476, %v477
        %v480 = vmax.f32 %v478, %v479
        %481 = vst [vmem:[%s215] sm:$0xff] %v480
        %s482 = sand.u32 %s118, 1
        %s483 = scalar_lea.sflag [#allocation4], %s482
        %s484 = sand.u32 %s118, 1
        %s485 = smul.addr %s484, 8
        %s486 = scalar_lea.vmem [#allocation5], %s485
        // Predicated region
        $region41: #{tpu_custom_call.1} parent=35 // pred_check
          %p487 = pneg %p128
        $region42: #{tpu_custom_call.1} parent=35 // pred_check_branch
          %489 = sbr.rel (%p487) target = $region44
        $region43: #{tpu_custom_call.1} parent=35 // pred_region
          %s491 = ssub.s32 128, 128
          %492 = vsyncadd %s483, %s491
          %s493 = smul.addr %s21, 128
          %s494 = scalar_lea.hbm %s4, %s493
          %s496 = sshll.u32 %s486, 4
          %s497 = int_to_ptr.vmem [resolvable:$true] %s496
          %499 = dma.vmem_to_hbm [thread:$0]  %s497, 128, %s494, %s483
        $region44: #{tpu_custom_call.1} parent=35 // pred_fallthru
          _
      $region36: #{tpu_custom_call.1} parent=5 // pred_fallthru
        _
      %p500 = scmp.le.s32.totalorder 2, %s16
      // Predicated region
      $region45: #{tpu_custom_call.1} parent=5 // pred_check
        %p501 = pneg %p500
      $region46: #{tpu_custom_call.1} parent=5 // pred_check_branch
        %503 = sbr.rel (%p501) target = $region48
      $region47: #{tpu_custom_call.1} parent=5 // pred_region
        %s504 = ssub.s32 %s16, 2
        // Predicated region
        $region49: #{tpu_custom_call.1} parent=47 // pred_check
          %p505 = pneg %p134
        $region50: #{tpu_custom_call.1} parent=47 // pred_check_branch
          %507 = sbr.rel (%p505) target = $region52
        $region51: #{tpu_custom_call.1} parent=47 // pred_region
          %s508 = sand.u32 %s119, 1
          %s509 = scalar_lea.sflag [#allocation4], %s508
          %s510 = sand.u32 %s119, 1
          %s511 = smul.addr %s510, 8
          %s512 = scalar_lea.vmem [#allocation5], %s511
          %513 = dma.done %s509, 128
        $region52: #{tpu_custom_call.1} parent=47 // pred_fallthru
          _
      $region48: #{tpu_custom_call.1} parent=5 // pred_fallthru
        _
    $region6: #{tpu_custom_call.1} parent=1 // loop_footer
      %s20 = sadd.s32 1, %s16
    $region7: #{tpu_custom_call.1} parent=1 // loop_footer_branch
      %15 = sbr.rel target = $region3
    $region8: #{tpu_custom_call.1} parent=1 // loop_exit
      _
    %514 = vsyncpa [#allocation3], 1
    %s515 = scalar_lea.sflag [#allocation3], 1
    %516 = vsyncpa %s515, 1
    %517 = vsyncpa [#allocation4], 1
    %s518 = scalar_lea.sflag [#allocation4], 1
    %519 = vsyncpa %s518, 1

</llo_original>
